<compile_context>
chip_gen: v6e
topology: v6e:2x2x1
jax: 0.10.0
libtpu: 0.0.40
codegen_flags: <defaults>
</compile_context>

<pallas_src>
import functools

import jax
import jax.numpy as jnp
from jax.experimental import pallas as pl
from jax.experimental.pallas import tpu as pltpu

_LANE = 128
_MAX_BLOCK_BYTES = 4 * 1024 * 1024      # 4 MiB per block per array
_VMEM_LIMIT_BYTES = 32 * 1024 * 1024    # in+out double-buffered (16 MiB) + headroom


def _h_sigmoid_kernel(x_ref, o_ref):
    x = x_ref[...]
    # ReLU6(x + 3) / 6  ==  clip(x + 3, 0, 6) * (1/6)
    # Weak-typed Python constants keep the native dtype (f32->f32, bf16->bf16).
    o_ref[...] = (jnp.clip(x + 3.0, 0.0, 6.0) * (1.0 / 6.0)).astype(o_ref.dtype)


def _h_sigmoid_jnp(x):
    return (jnp.clip(x + 3.0, 0.0, 6.0) * (1.0 / 6.0)).astype(x.dtype)


def _round_up(a, b):
    return (a + b - 1) // b * b


@functools.lru_cache(maxsize=None)
def _multi_tensorcore():
    # Split / balance the "parallel" grid axis only on chips with >1 TensorCore
    # (v7x; v4/v5p megacore).  Pure perf hint -- correctness never depends on it.
    try:
        kind = jax.devices()[0].device_kind.lower()
    except Exception:
        return False
    return any(tag in kind for tag in ("v7", "v4", "v5p"))


def _sublane(itemsize):
    # dtype-correct packed sublane multiple: 8 (f32) / 16 (bf16) / 32 (int8).
    return max(8, 32 // max(1, itemsize))


def _run_slab(x2d):
    """Run the kernel on a lane-dense (rows, 128) slab."""
    rows, _ = x2d.shape
    itemsize = x2d.dtype.itemsize
    sub = _sublane(itemsize)
    multi_tc = _multi_tensorcore()

    max_block_rows = max(sub, (_MAX_BLOCK_BYTES // (_LANE * itemsize)) // sub * sub)

    if rows <= max_block_rows:
        if multi_tc and rows >= 2 * sub:
            # Two balanced, sublane-aligned blocks so both TensorCores get work.
            block_rows = _round_up(pl.cdiv(rows, 2), sub)
        else:
            # Single full-extent block: no divisibility constraint, no padding,
            # no extra grid-step overhead on single-TC chips.
            block_rows = rows
    else:
        grid = pl.cdiv(rows, max_block_rows)
        if multi_tc:
            grid = _round_up(grid, 2)           # balanced work across 2 TCs
        block_rows = _round_up(pl.cdiv(rows, grid), sub)

    grid = pl.cdiv(rows, block_rows)            # last block may be partial (OOB
                                                # reads unused, OOB writes dropped)

    return pl.pallas_call(
        _h_sigmoid_kernel,
        out_shape=jax.ShapeDtypeStruct((rows, _LANE), x2d.dtype),
        grid=(grid,),
        in_specs=[pl.BlockSpec((block_rows, _LANE), lambda i: (i, 0))],
        out_specs=pl.BlockSpec((block_rows, _LANE), lambda i: (i, 0)),
        compiler_params=pltpu.CompilerParams(
            dimension_semantics=("parallel",),
            vmem_limit_bytes=_VMEM_LIMIT_BYTES,
        ),
    )(x2d)


def h_sigmoid(x):
    """Elementwise hard-sigmoid, any shape / floating dtype."""
    orig_shape = x.shape
    n = x.size
    if n == 0:
        return x

    if n % _LANE == 0:
        # Fast path: pure reshape, no pad, no slice.
        rows = n // _LANE
        return _run_slab(x.reshape(rows, _LANE)).reshape(orig_shape)

    # Ragged size: kernel on the 128-aligned bulk, tiny jnp epilogue on the
    # (<128-element) tail.  Avoids materializing padded/sliced full copies.
    flat = x.reshape(-1)
    bulk = (n // _LANE) * _LANE
    if bulk == 0:
        return _h_sigmoid_jnp(flat).reshape(orig_shape)
    head = _run_slab(flat[:bulk].reshape(bulk // _LANE, _LANE)).reshape(-1)
    tail = _h_sigmoid_jnp(flat[bulk:])
    return jnp.concatenate([head, tail]).reshape(orig_shape)


@jax.jit
def h_sigmoid_forward(x):
    return h_sigmoid(x)


if __name__ == "__main__":
    key = jax.random.PRNGKey(0)
    # Small 4D input, as the module would see inside a conv net.
    x = jax.random.normal(key, (2, 4, 16, 16), jnp.float32) * 4.0

    out = jax.block_until_ready(h_sigmoid_forward(x))
    ref = jnp.clip(x + 3.0, 0.0, 6.0) / 6.0

    assert out.shape == x.shape
    assert out.dtype == x.dtype
    assert bool(jnp.all(jnp.isfinite(out)))
    assert bool(jnp.allclose(out, ref, atol=1e-6, rtol=1e-6))

    # Secondary check: ragged numel (exercises bulk-kernel + jnp-tail path).
    x2 = jax.random.normal(jax.random.PRNGKey(1), (2, 3, 17, 17), jnp.float32) * 4.0
    out2 = jax.block_until_ready(h_sigmoid_forward(x2))
    ref2 = jnp.clip(x2 + 3.0, 0.0, 6.0) / 6.0
    assert bool(jnp.allclose(out2, ref2, atol=1e-6, rtol=1e-6))

    print("KERNEL_OK")
</pallas_src>

<mosaic_0001>
module attributes {stable_mosaic.version = 11 : i64} {
  func.func @_h_sigmoid_kernel(%arg0: i32, %arg1: memref<16x128xf32, #tpu.memory_space<vmem>>, %arg2: memref<16x128xf32, #tpu.memory_space<vmem>>) attributes {dimension_semantics = [#tpu.dimension_semantics<parallel>], iteration_bounds = array<i64: 1>, scalar_prefetch = 0 : i64, scratch_operands = 0 : i64, tpu.core_type = #tpu.core_type<tc>, window_params = [{transform_indices = @transform_0, window_bounds = array<i64: 16, 128>}, {transform_indices = @transform_1, window_bounds = array<i64: 16, 128>}]} {
    %c0 = arith.constant 0 : index
    %c0_0 = arith.constant 0 : index
    %0 = vector.load %arg1[%c0, %c0_0] : memref<16x128xf32, #tpu.memory_space<vmem>>, vector<16x128xf32>
    %cst = arith.constant 3.000000e+00 : f32
    %1 = vector.broadcast %cst : f32 to vector<16x128xf32>
    %2 = arith.addf %0, %1 : vector<16x128xf32>
    %cst_1 = arith.constant 0.000000e+00 : f32
    %cst_2 = arith.constant 6.000000e+00 : f32
    %3 = vector.broadcast %cst_1 : f32 to vector<16x128xf32>
    %4 = arith.maximumf %3, %2 : vector<16x128xf32>
    %5 = vector.broadcast %cst_2 : f32 to vector<16x128xf32>
    %6 = arith.minimumf %5, %4 : vector<16x128xf32>
    %cst_3 = arith.constant 0.166666672 : f32
    %7 = vector.broadcast %cst_3 : f32 to vector<16x128xf32>
    %8 = arith.mulf %6, %7 : vector<16x128xf32>
    %c0_4 = arith.constant 0 : index
    %c0_5 = arith.constant 0 : index
    %9 = vector.load %arg2[%c0_4, %c0_5] : memref<16x128xf32, #tpu.memory_space<vmem>>, vector<16x128xf32>
    tpu.vector_store %arg2[%c0_4, %c0_5], %8 {strides = array<i32>} : memref<16x128xf32, #tpu.memory_space<vmem>>, vector<16x128xf32>,
    return
  }
  func.func @transform_0(%arg0: i32) -> (i32, i32) {
    %c0_i32 = arith.constant 0 : i32
    %c0_i32_0 = arith.constant 0 : i32
    return %arg0, %c0_i32 : i32, i32
  }
  func.func @transform_1(%arg0: i32) -> (i32, i32) {
    %c0_i32 = arith.constant 0 : i32
    %c0_i32_0 = arith.constant 0 : i32
    return %arg0, %c0_i32 : i32, i32
  }
}

</mosaic_0001>

<llo_original>
// kernel: h_sigmoid_forward.1
$region0: #{h_sigmoid_forward.1}
  #allocation0 [shape = 'u32[]', space=smem, size = 0x4, offset = 0x4, fixed_abs, tag = 'smem constant byte address 0x4 - core index']
  #allocation1 [shape = 'u32[144,128]{1,0:T(1,128)}', space=vmem, size = 0x12000, scoped, tag = 'internal scratch']
  %s0 = inlined_call_operand.vmem [shape: f32[16,128], index: 0, kind: input, shape index: {}]
  %s1 = inlined_call_operand.vmem [shape: f32[16,128], index: 1, kind: output, shape index: {}]
  %s2 = sld [smem:[#allocation0]]
  $region14: #{h_sigmoid_forward.1} parent=0
    _
  %s4 = ssub.s32 1, %s2
  %s5 = scalar_select 0, %s4, %s2
  // Predicated region
  $region2: #{h_sigmoid_forward.1} parent=0 // pred_check
    _
  $region3: #{h_sigmoid_forward.1} parent=0 // pred_check_branch
    %7 = sbr.rel (0) target = $region5
  $region4: #{h_sigmoid_forward.1} parent=0 // pred_region
    _
  $region5: #{h_sigmoid_forward.1} parent=0 // pred_fallthru
    _
  %v8 = vld [vmem:[%s0] sm:$0xff]
  %v9 = vld [vmem:[%s0 + $0x8] sm:$0xff]
  %v10 = vadd.f32 %v8, 3.0
  %v11 = vadd.f32 %v9, 3.0
  %v12 = vmax.f32 %v10, 0.0
  %v13 = vmax.f32 %v11, 0.0
  %v14 = vmin.f32 %v12, 6.0
  %v15 = vmin.f32 %v13, 6.0
  %v16 = vmul.f32 %v14, 0.16666667
  %v17 = vmul.f32 %v15, 0.16666667
  %18 = vst [vmem:[%s1] sm:$0xff] %v16
  %19 = vst [vmem:[%s1 + $0x8] sm:$0xff] %v17
  // Predicated region
  $region6: #{h_sigmoid_forward.1} parent=0 // pred_check
    _
  $region7: #{h_sigmoid_forward.1} parent=0 // pred_check_branch
    %21 = sbr.rel (0) target = $region9
  $region8: #{h_sigmoid_forward.1} parent=0 // pred_region
    _
  $region9: #{h_sigmoid_forward.1} parent=0 // pred_fallthru
    _
  // Predicated region
  $region10: #{h_sigmoid_forward.1} parent=0 // pred_check
    _
  $region11: #{h_sigmoid_forward.1} parent=0 // pred_check_branch
    %23 = sbr.rel (0) target = $region13
  $region12: #{h_sigmoid_forward.1} parent=0 // pred_region
    _
  $region13: #{h_sigmoid_forward.1} parent=0 // pred_fallthru
    _

</llo_original>
